<compile_context>
chip_gen: v7x
topology: tpu7x:2x2x1
jax: 0.10.0
libtpu: 0.0.40
codegen_flags: <defaults>
</compile_context>

<pallas_src>
import jax
import jax.numpy as jnp
from jax.experimental import pallas as pl
from jax.experimental.pallas import tpu as pltpu


def _round_up(x, m):
    return ((x + m - 1) // m) * m


def _fused_kernel(hidden_ref, logits_ref, attn_ref, src_map_ref, w_ref, b_ref,
                  out_prob_ref, copy_prob_ref):
    # hidden_ref  : (1, TT, H)         logits_ref  : (1, TT, Vp)
    # attn_ref    : (1, TT, Sp)        src_map_ref : (1, Sp, 1) int32
    # w_ref       : (1, H)   VMEM      b_ref       : (1, 1)     SMEM
    # out_prob_ref: (1, TT, Vp)        copy_prob_ref: (1, TT, Cp)

    # --- softmax over the (padded) vocab axis:  torch.softmax(orig_prob, 1) ---
    logits = logits_ref[0].astype(jnp.float32)                       # (TT, Vp)
    m = jnp.max(logits, axis=-1, keepdims=True)
    e = jnp.exp(logits - m)
    inv = pl.reciprocal(jnp.sum(e, axis=-1, keepdims=True), approx=False)
    prob = e * inv                                                   # (TT, Vp)

    # --- p_copy = sigmoid(hidden @ W^T + b),  W: (1, H), b: scalar in SMEM ---
    h = hidden_ref[0].astype(jnp.float32)                            # (TT, H)
    w = w_ref[...].astype(jnp.float32)                               # (1, H)
    score = jnp.sum(h * w, axis=-1, keepdims=True) + b_ref[0, 0]     # (TT, 1)
    p_copy = jax.nn.sigmoid(score)                                   # (TT, 1)

    out_prob_ref[0] = (prob * (1.0 - p_copy)).astype(out_prob_ref.dtype)

    # --- copy_prob = (attn * p_copy) @ one_hot(src_map)  (MXU) ---------------
    mul_attn = attn_ref[0].astype(jnp.float32) * p_copy              # (TT, Sp)
    src_col = src_map_ref[0]                                         # (Sp, 1)
    cp = copy_prob_ref.shape[2]
    ids = jax.lax.broadcasted_iota(jnp.int32, (src_col.shape[0], cp), 1)
    onehot = (src_col == ids).astype(jnp.float32)                    # (Sp, Cp)
    copy = jnp.dot(mul_attn, onehot, preferred_element_type=jnp.float32)
    copy_prob_ref[0] = copy.astype(copy_prob_ref.dtype)


def copy_generator_forward(hidden, orig_prob, attn, src_map, w, b, batch,
                           cvocab=None, use_entmax=False):
    """JAX/Pallas equivalent of CopyGenerator.forward (softmax path)."""
    # TODO(synk): entmax_bisect (iterative bisection) path not implemented.
    assert not use_entmax
    N, H = hidden.shape
    V = orig_prob.shape[1]
    S = attn.shape[1]
    tlen = N // batch
    assert batch * tlen == N

    if cvocab is None:
        # Data-dependent fallback; prefer passing a static cvocab to avoid a
        # device->host sync and per-vocab-size recompiles.
        cvocab = int(jnp.max(src_map)) + 1

    cpad = _round_up(cvocab, 128)   # lane-dense copy_prob stores / MXU N-dim
    spad = _round_up(S, 128)        # lane-dense attn loads / MXU K-dim
    vpad = _round_up(V, 128)        # lane-dense softmax + out_prob stores

    # batch-major 3-D views (row-major reshape == torch .view)
    hidden3 = hidden.reshape(batch, tlen, H)
    logits3 = orig_prob.reshape(batch, tlen, V)
    attn3 = attn.reshape(batch, tlen, S)
    src2 = src_map.astype(jnp.int32)

    if vpad != V:
        # very negative pad -> exp underflows to 0, softmax unaffected
        logits3 = jnp.pad(logits3, ((0, 0), (0, 0), (0, vpad - V)),
                          constant_values=-1e9)
    if spad != S:
        attn3 = jnp.pad(attn3, ((0, 0), (0, 0), (0, spad - S)))
        src2 = jnp.pad(src2, ((0, 0), (0, spad - S)))
    src3 = src2.reshape(batch, spad, 1)

    # Row-tile size: keep the double-buffered per-row slabs inside a ~32 MiB
    # working-set budget (safe for v7x's 64 MiB physical VMEM).
    bytes_per_row = 4 * (H + 2 * vpad + spad + cpad)
    max_rows = max(8, (32 << 20) // (3 * bytes_per_row))
    if tlen <= max_rows:
        tt, tpad = tlen, tlen
    else:
        tt = max(8, (max_rows // 8) * 8)
        tpad = _round_up(tlen, tt)
    if tpad != tlen:
        pad = ((0, 0), (0, tpad - tlen), (0, 0))
        hidden3 = jnp.pad(hidden3, pad)
        logits3 = jnp.pad(logits3, pad)
        attn3 = jnp.pad(attn3, pad)

    grid = (batch, tpad // tt)

    out3, copy3 = pl.pallas_call(
        _fused_kernel,
        out_shape=(jax.ShapeDtypeStruct((batch, tpad, vpad), jnp.float32),
                   jax.ShapeDtypeStruct((batch, tpad, cpad), jnp.float32)),
        grid=grid,
        in_specs=[
            pl.BlockSpec((1, tt, H), lambda bi, ti: (bi, ti, 0)),
            pl.BlockSpec((1, tt, vpad), lambda bi, ti: (bi, ti, 0)),
            pl.BlockSpec((1, tt, spad), lambda bi, ti: (bi, ti, 0)),
            pl.BlockSpec((1, spad, 1), lambda bi, ti: (bi, 0, 0)),
            pl.BlockSpec((1, H), lambda bi, ti: (0, 0)),
            pl.BlockSpec(memory_space=pltpu.MemorySpace.SMEM),
        ],
        out_specs=(pl.BlockSpec((1, tt, vpad), lambda bi, ti: (bi, ti, 0)),
                   pl.BlockSpec((1, tt, cpad), lambda bi, ti: (bi, ti, 0))),
        compiler_params=pltpu.CompilerParams(
            dimension_semantics=("parallel", "parallel"),
            vmem_limit_bytes=48 << 20),
    )(hidden3, logits3, attn3, src3, w, b)

    out_prob = out3[:, :tlen, :V].reshape(N, V)
    copy_prob = copy3[:, :tlen, :cvocab].reshape(N, cvocab)
    return out_prob, copy_prob


def reference_forward(hidden, orig_prob, attn, src_map, w, b, batch, cvocab):
    """Pure-JAX reference mirroring the PyTorch code."""
    onehot = jax.nn.one_hot(src_map.astype(jnp.int32), cvocab, dtype=jnp.float32)
    prob = jax.nn.softmax(orig_prob, axis=1)
    p_copy = jax.nn.sigmoid(hidden @ w.T + b)                        # (N, 1)
    out_prob = prob * (1.0 - p_copy)
    mul_attn = attn * p_copy
    S = attn.shape[1]
    copy_prob = jnp.einsum("bts,bsc->btc",
                           mul_attn.reshape(batch, -1, S), onehot)
    return out_prob, copy_prob.reshape(-1, cvocab)


if __name__ == "__main__":
    key = jax.random.PRNGKey(0)
    batch, tlen, input_size, vocab, slen = 2, 8, 32, 64, 16
    N = batch * tlen

    k1, k2, k3, k4, k5, k6 = jax.random.split(key, 6)
    hidden = jax.random.normal(k1, (N, input_size), jnp.float32)
    orig_prob = jax.random.normal(k2, (N, vocab), jnp.float32)
    attn = jax.nn.softmax(jax.random.normal(k3, (N, slen), jnp.float32), axis=-1)
    # extended-vocab indices per source position
    src_map = jax.random.randint(k4, (batch, slen), 0, 24).astype(jnp.int32)

    # nn.Linear(input_size, 1): weight (1, input_size), bias -> (1, 1) here
    w = 0.1 * jax.random.normal(k5, (1, input_size), jnp.float32)
    b = 0.1 * jax.random.normal(k6, (1, 1), jnp.float32)

    # static extended-vocab size (matches torch.max(src_map) + 1)
    cvocab = int(jnp.max(src_map)) + 1

    out_prob, copy_prob = copy_generator_forward(
        hidden, orig_prob, attn, src_map, w, b, batch,
        cvocab=cvocab, use_entmax=False)
    jax.block_until_ready((out_prob, copy_prob))

    ref_out, ref_copy = reference_forward(hidden, orig_prob, attn, src_map,
                                          w, b, batch, cvocab)
    assert out_prob.shape == ref_out.shape and copy_prob.shape == ref_copy.shape
    assert jnp.allclose(out_prob, ref_out, atol=1e-5, rtol=1e-5)
    assert jnp.allclose(copy_prob, ref_copy, atol=1e-5, rtol=1e-5)

    print("KERNEL_OK")
</pallas_src>

<mosaic_0001>
module attributes {stable_mosaic.version = 11 : i64} {
  func.func @_fused_kernel(%arg0: i32, %arg1: i32, %arg2: memref<1x8x32xf32, #tpu.memory_space<vmem>>, %arg3: memref<1x8x128xf32, #tpu.memory_space<vmem>>, %arg4: memref<1x8x128xf32, #tpu.memory_space<vmem>>, %arg5: memref<1x128x1xi32, #tpu.memory_space<vmem>>, %arg6: memref<1x32xf32, #tpu.memory_space<vmem>>, %arg7: memref<1x1xf32, #tpu.memory_space<smem>>, %arg8: memref<1x8x128xf32, #tpu.memory_space<vmem>>, %arg9: memref<1x8x128xf32, #tpu.memory_space<vmem>>) attributes {dimension_semantics = [#tpu.dimension_semantics<parallel>, #tpu.dimension_semantics<parallel>], iteration_bounds = array<i64: 2, 1>, scalar_prefetch = 0 : i64, scratch_operands = 0 : i64, tpu.core_type = #tpu.core_type<tc>, window_params = [{transform_indices = @transform_0, window_bounds = array<i64: 1, 8, 32>}, {transform_indices = @transform_1, window_bounds = array<i64: 1, 8, 128>}, {transform_indices = @transform_2, window_bounds = array<i64: 1, 8, 128>}, {transform_indices = @transform_3, window_bounds = array<i64: 1, 128, 1>}, {pipeline_mode = #tpu.pipeline_mode<synchronous>, transform_indices = @transform_4, window_bounds = array<i64: 1, 32>}, {transform_indices = @transform_5, window_bounds = array<i64: 1, 1>}, {transform_indices = @transform_6, window_bounds = array<i64: 1, 8, 128>}, {transform_indices = @transform_7, window_bounds = array<i64: 1, 8, 128>}]} {
    %c0 = arith.constant 0 : index
    %c0_0 = arith.constant 0 : index
    %c0_1 = arith.constant 0 : index
    %0 = vector.load %arg3[%c0, %c0_0, %c0_1] : memref<1x8x128xf32, #tpu.memory_space<vmem>>, vector<1x8x128xf32>
    %1 = vector.shape_cast %0 : vector<1x8x128xf32> to vector<8x128xf32>
    %cst = arith.constant dense<0xFF800000> : vector<8xf32>
    %2 = vector.multi_reduction <maximumf>, %1, %cst [1] : vector<8x128xf32> to vector<8xf32>
    %3 = vector.shape_cast %2 : vector<8xf32> to vector<8x1xf32>
    %4 = vector.broadcast %3 : vector<8x1xf32> to vector<8x128xf32>
    %5 = arith.subf %1, %4 : vector<8x128xf32>
    %6 = math.exp %5 : vector<8x128xf32>
    %cst_2 = arith.constant dense<0.000000e+00> : vector<8xf32>
    %7 = vector.multi_reduction <add>, %6, %cst_2 [1] : vector<8x128xf32> to vector<8xf32>
    %8 = vector.shape_cast %7 : vector<8xf32> to vector<8x1xf32>
    %9 = tpu.reciprocal %8 : vector<8x1xf32> -> vector<8x1xf32>
    %10 = vector.broadcast %9 : vector<8x1xf32> to vector<8x128xf32>
    %11 = arith.mulf %6, %10 : vector<8x128xf32>
    %c0_3 = arith.constant 0 : index
    %c0_4 = arith.constant 0 : index
    %c0_5 = arith.constant 0 : index
    %12 = vector.load %arg2[%c0_3, %c0_4, %c0_5] : memref<1x8x32xf32, #tpu.memory_space<vmem>>, vector<1x8x32xf32>
    %13 = vector.shape_cast %12 : vector<1x8x32xf32> to vector<8x32xf32>
    %c0_6 = arith.constant 0 : index
    %c0_7 = arith.constant 0 : index
    %14 = vector.load %arg6[%c0_6, %c0_7] : memref<1x32xf32, #tpu.memory_space<vmem>>, vector<1x32xf32>
    %15 = vector.broadcast %14 : vector<1x32xf32> to vector<8x32xf32>
    %16 = arith.mulf %13, %15 : vector<8x32xf32>
    %cst_8 = arith.constant dense<0.000000e+00> : vector<8xf32>
    %17 = vector.multi_reduction <add>, %16, %cst_8 [1] : vector<8x32xf32> to vector<8xf32>
    %18 = vector.shape_cast %17 : vector<8xf32> to vector<8x1xf32>
    %c0_9 = arith.constant 0 : index
    %c0_10 = arith.constant 0 : index
    %19 = memref.load %arg7[%c0_9, %c0_10] : memref<1x1xf32, #tpu.memory_space<smem>>
    %20 = vector.broadcast %19 : f32 to vector<8x1xf32>
    %21 = arith.addf %18, %20 : vector<8x1xf32>
    %22 = arith.negf %21 : vector<8x1xf32>
    %23 = math.exp %22 : vector<8x1xf32>
    %cst_11 = arith.constant 1.000000e+00 : f32
    %24 = vector.broadcast %cst_11 : f32 to vector<8x1xf32>
    %25 = arith.addf %24, %23 : vector<8x1xf32>
    %26 = arith.divf %24, %25 : vector<8x1xf32>
    %cst_12 = arith.constant 1.000000e+00 : f32
    %27 = vector.broadcast %cst_12 : f32 to vector<8x1xf32>
    %28 = arith.subf %27, %26 : vector<8x1xf32>
    %29 = vector.broadcast %28 : vector<8x1xf32> to vector<8x128xf32>
    %30 = arith.mulf %11, %29 : vector<8x128xf32>
    %c0_13 = arith.constant 0 : index
    %c0_14 = arith.constant 0 : index
    %c0_15 = arith.constant 0 : index
    %31 = vector.load %arg8[%c0_13, %c0_14, %c0_15] : memref<1x8x128xf32, #tpu.memory_space<vmem>>, vector<1x8x128xf32>
    %32 = vector.shape_cast %31 : vector<1x8x128xf32> to vector<8x128xf32>
    %33 = vector.shape_cast %30 : vector<8x128xf32> to vector<1x8x128xf32>
    tpu.vector_store %arg8[%c0_13, %c0_14, %c0_15], %33 {strides = array<i32>} : memref<1x8x128xf32, #tpu.memory_space<vmem>>, vector<1x8x128xf32>,
    %c0_16 = arith.constant 0 : index
    %c0_17 = arith.constant 0 : index
    %c0_18 = arith.constant 0 : index
    %34 = vector.load %arg4[%c0_16, %c0_17, %c0_18] : memref<1x8x128xf32, #tpu.memory_space<vmem>>, vector<1x8x128xf32>
    %35 = vector.shape_cast %34 : vector<1x8x128xf32> to vector<8x128xf32>
    %36 = vector.broadcast %26 : vector<8x1xf32> to vector<8x128xf32>
    %37 = arith.mulf %35, %36 : vector<8x128xf32>
    %c0_19 = arith.constant 0 : index
    %c0_20 = arith.constant 0 : index
    %c0_21 = arith.constant 0 : index
    %38 = vector.load %arg5[%c0_19, %c0_20, %c0_21] : memref<1x128x1xi32, #tpu.memory_space<vmem>>, vector<1x128x1xi32>
    %39 = vector.shape_cast %38 : vector<1x128x1xi32> to vector<128x1xi32>
    %40 = tpu.iota {dimensions = array<i32: 1>} : vector<128x128xi32>
    %41 = vector.broadcast %39 : vector<128x1xi32> to vector<128x128xi32>
    %42 = arith.cmpi eq, %41, %40 : vector<128x128xi32>
    %43 = arith.extui %42 : vector<128x128xi1> to vector<128x128xi32>
    %44 = arith.sitofp %43 : vector<128x128xi32> to vector<128x128xf32>
    %cst_22 = arith.constant dense<0.000000e+00> : vector<8x128xf32>
    %45 = tpu.matmul %37, %44, %cst_22 {dimension_numbers = #tpu.dot_dimension_numbers<[1], [0], [0], [1], [0, 0, 1, 1], [], []>} : vector<8x128xf32>, vector<128x128xf32>, vector<8x128xf32> -> vector<8x128xf32>
    %c0_23 = arith.constant 0 : index
    %c0_24 = arith.constant 0 : index
    %c0_25 = arith.constant 0 : index
    %46 = vector.load %arg9[%c0_23, %c0_24, %c0_25] : memref<1x8x128xf32, #tpu.memory_space<vmem>>, vector<1x8x128xf32>
    %47 = vector.shape_cast %46 : vector<1x8x128xf32> to vector<8x128xf32>
    %48 = vector.shape_cast %45 : vector<8x128xf32> to vector<1x8x128xf32>
    tpu.vector_store %arg9[%c0_23, %c0_24, %c0_25], %48 {strides = array<i32>} : memref<1x8x128xf32, #tpu.memory_space<vmem>>, vector<1x8x128xf32>,
    return
  }
  func.func @transform_0(%arg0: i32, %arg1: i32) -> (i32, i32, i32) {
    %c0_i32 = arith.constant 0 : i32
    %c0_i32_0 = arith.constant 0 : i32
    return %arg0, %arg1, %c0_i32 : i32, i32, i32
  }
  func.func @transform_1(%arg0: i32, %arg1: i32) -> (i32, i32, i32) {
    %c0_i32 = arith.constant 0 : i32
    %c0_i32_0 = arith.constant 0 : i32
    return %arg0, %arg1, %c0_i32 : i32, i32, i32
  }
  func.func @transform_2(%arg0: i32, %arg1: i32) -> (i32, i32, i32) {
    %c0_i32 = arith.constant 0 : i32
    %c0_i32_0 = arith.constant 0 : i32
    return %arg0, %arg1, %c0_i32 : i32, i32, i32
  }
  func.func @transform_3(%arg0: i32, %arg1: i32) -> (i32, i32, i32) {
    %c0_i32 = arith.constant 0 : i32
    %c0_i32_0 = arith.constant 0 : i32
    %c0_i32_1 = arith.constant 0 : i32
    return %arg0, %c0_i32, %c0_i32_0 : i32, i32, i32
  }
  func.func @transform_4(%arg0: i32, %arg1: i32) -> (i32, i32) {
    %c0_i32 = arith.constant 0 : i32
    %c0_i32_0 = arith.constant 0 : i32
    %c0_i32_1 = arith.constant 0 : i32
    return %c0_i32, %c0_i32_0 : i32, i32
  }
  func.func @transform_5(%arg0: i32, %arg1: i32) -> (i32, i32) {
    %c0_i32 = arith.constant 0 : i32
    %c0_i32_0 = arith.constant 0 : i32
    %c0_i32_1 = arith.constant 0 : i32
    return %c0_i32, %c0_i32_0 : i32, i32
  }
  func.func @transform_6(%arg0: i32, %arg1: i32) -> (i32, i32, i32) {
    %c0_i32 = arith.constant 0 : i32
    %c0_i32_0 = arith.constant 0 : i32
    return %arg0, %arg1, %c0_i32 : i32, i32, i32
  }
  func.func @transform_7(%arg0: i32, %arg1: i32) -> (i32, i32, i32) {
    %c0_i32 = arith.constant 0 : i32
    %c0_i32_0 = arith.constant 0 : i32
    return %arg0, %arg1, %c0_i32 : i32, i32, i32
  }
}

</mosaic_0001>

<llo_original>
// kernel: tpu_custom_call.1
$region0: #{tpu_custom_call.1}
  #allocation0 [shape = 'u32[]', space=smem, size = 0x4, offset = 0x4, fixed_abs, tag = 'smem constant byte address 0x4 - core index']
  #allocation1 [shape = 'u32[144,128]{1,0:T(1,128)}', space=vmem, size = 0x12000, scoped, tag = 'internal scratch']
  #allocation2 [shape = 'f32[1,1]{1,0:T(1,128)S(6)}', space=smem, size = 0x200, scoped, tag = 'scoped memory for tpu_custom_call.1']
  %s0 = inlined_call_operand.vmem [shape: f32[2,8,32], index: 0, kind: input, shape index: {}]
  %s1 = inlined_call_operand.vmem [shape: f32[2,8,128], index: 1, kind: input, shape index: {}]
  %s2 = inlined_call_operand.vmem [shape: f32[2,8,128], index: 2, kind: input, shape index: {}]
  %s3 = inlined_call_operand.vmem [shape: s32[2,128,1], index: 3, kind: input, shape index: {}]
  %s4 = inlined_call_operand.vmem [shape: f32[1,32], index: 4, kind: input, shape index: {}]
  %s5 = inlined_call_operand.<no memory space> [shape: f32[1,1], index: 5, kind: input, shape index: {}]
  %s6 = inlined_call_operand.hbm [shape: f32[2,8,128], index: 6, kind: output, shape index: {0}]
  %s7 = inlined_call_operand.hbm [shape: f32[2,8,128], index: 7, kind: output, shape index: {1}]
  %8 = xla_tuple %s6, %s7
  %s9 = sld [smem:[#allocation0]]
  $region65: #{tpu_custom_call.1} parent=0
    _
  %s11 = ssub.s32 1, %s9
  %s12 = scalar_select 0, %s11, %s9
  %13 = sst [smem:[#allocation2]] %s5
  $region1: #{tpu_custom_call.1} parent=0
    #allocation3 [shape = 'u8[8192]{0}', space=vmem, size = 0x2000, scoped, tag = 'output window, operand 0']
    #allocation4 [shape = 's32[2]{0}', space=sflag, size = 0x8, scoped, tag = 'scoped memory for tpu_custom_call.1']
    #allocation5 [shape = 'u8[8192]{0}', space=vmem, size = 0x2000, scoped, tag = 'output window, operand 1']
    #allocation6 [shape = 's32[2]{0}', space=sflag, size = 0x8, scoped, tag = 'scoped memory for tpu_custom_call.1']
    %14 = vsyncpa [#allocation4], 0
    %s15 = scalar_lea.sflag [#allocation4], 1
    %16 = vsyncpa %s15, 0
    %17 = vsyncpa [#allocation6], 0
    %s18 = scalar_lea.sflag [#allocation6], 1
    %19 = vsyncpa %s18, 0
    loop: start=0, step=1, limit=4
    $region2: #{tpu_custom_call.1} parent=1 // loop_pre_header
      _
    $region3: #{tpu_custom_call.1} parent=1 // loop_header
      %s21 = sphi 0, %s25
      %p22 = scmp.ge.s32.totalorder %s21, 4
      %s28 = sphi 0, %s40
      %s29 = sphi 0, %s36
      %s30 = sphi 0, %s28
      %s31 = sphi 0, %s29
      %s32 = sphi 0, %s30
      %s33 = sphi 0, %s31
      %s45 = sphi 0, %s47
      %s48 = sphi 0, %s45
      %s49 = sphi 0, %s48
      %s65 = sphi 0, %s49
      %s73 = sphi 0, %s75
      %s76 = sphi 0, %s73
      %s77 = sphi 0, %s76
      %s93 = sphi 0, %s77
      %s101 = sphi 0, %s103
      %s104 = sphi 0, %s101
      %s105 = sphi 0, %s104
      %s121 = sphi 0, %s105
      %s127 = sphi 0, %s129
      %s130 = sphi 0, %s127
      %s131 = sphi 0, %s130
      %s147 = sphi 0, %s131
      %s151 = sphi 0, %s151
      %s153 = sphi 0, %s151
      %s154 = sphi 0, %s153
      %s168 = sphi 0, %s154
      %s172 = sphi 0, %s172
      %s174 = sphi 0, %s172
      %s175 = sphi 0, %s174
      %s189 = sphi 0, %s175
      %s197 = sphi 0, %s199
      %s200 = sphi 0, %s197
      %s201 = sphi 0, %s200
      %s217 = sphi 0, %s201
      %s225 = sphi 0, %s227
      %s228 = sphi 0, %s225
      %s229 = sphi 0, %s228
      %s245 = sphi 0, %s229
    $region4: #{tpu_custom_call.1} parent=1 // loop_header_branch
      %24 = sbr.rel (%p22) target = $region8
    $region5: #{tpu_custom_call.1} parent=1 // loop_body
      %s26 = ssub.s32 %s21, 1
      %s27 = ssub.s32 %s21, 2
      %s34 = sadd.s32 1, %s29
      %p35 = scmp.ge.s32.totalorder %s34, 1
      %s36 = scalar_select %p35, 0, %s34
      %s37 = sadd.s32 1, %s28
      %s38 = scalar_select %p35, %s37, %s28
      %p39 = scmp.ge.s32.totalorder %s38, 2
      %s40 = scalar_select %p39, 0, %s38
      %s41 = ssub.s32 %s28, %s40
      %s42 = ssub.s32 %s29, %s36
      %s43 = sor.u32 %s41, %s42
      %p44 = scmp.eq.s32.totalorder %s43, 0
      %s46 = sadd.s32 %s45, 1
      %s47 = scalar_select %p44, %s45, %s46
      %p50 = pneg %p44
      %p51 = scmp.eq.s32.totalorder %s21, 1
      %p52 = por %p50, %p51
      %p53 = scmp.ne.s32.totalorder %s45, %s48
      %p54 = scmp.eq.s32.totalorder %s21, 0
      %p55 = por %p53, %p54
      %p56 = scmp.ne.s32.totalorder %s45, %s48
      %p57 = scmp.eq.s32.totalorder %s26, 1
      %p58 = por %p56, %p57
      %p59 = scmp.ne.s32.totalorder %s48, %s49
      %p60 = scmp.eq.s32.totalorder %s26, 0
      %p61 = por %p59, %p60
      %p62 = scmp.ne.s32.totalorder %s48, %s49
      %p63 = scmp.eq.s32.totalorder %s27, 1
      %p64 = por %p62, %p63
      %p66 = scmp.ne.s32.totalorder %s49, %s65
      %p67 = scmp.eq.s32.totalorder %s27, 0
      %p68 = por %p66, %p67
      %s69 = ssub.s32 %s28, %s40
      %s70 = ssub.s32 %s29, %s36
      %s71 = sor.u32 %s69, %s70
      %p72 = scmp.eq.s32.totalorder %s71, 0
      %s74 = sadd.s32 %s73, 1
      %s75 = scalar_select %p72, %s73, %s74
      %p78 = pneg %p72
      %p79 = scmp.eq.s32.totalorder %s21, 1
      %p80 = por %p78, %p79
      %p81 = scmp.ne.s32.totalorder %s73, %s76
      %p82 = scmp.eq.s32.totalorder %s21, 0
      %p83 = por %p81, %p82
      %p84 = scmp.ne.s32.totalorder %s73, %s76
      %p85 = scmp.eq.s32.totalorder %s26, 1
      %p86 = por %p84, %p85
      %p87 = scmp.ne.s32.totalorder %s76, %s77
      %p88 = scmp.eq.s32.totalorder %s26, 0
      %p89 = por %p87, %p88
      %p90 = scmp.ne.s32.totalorder %s76, %s77
      %p91 = scmp.eq.s32.totalorder %s27, 1
      %p92 = por %p90, %p91
      %p94 = scmp.ne.s32.totalorder %s77, %s93
      %p95 = scmp.eq.s32.totalorder %s27, 0
      %p96 = por %p94, %p95
      %s97 = ssub.s32 %s28, %s40
      %s98 = ssub.s32 %s29, %s36
      %s99 = sor.u32 %s97, %s98
      %p100 = scmp.eq.s32.totalorder %s99, 0
      %s102 = sadd.s32 %s101, 1
      %s103 = scalar_select %p100, %s101, %s102
      %p106 = pneg %p100
      %p107 = scmp.eq.s32.totalorder %s21, 1
      %p108 = por %p106, %p107
      %p109 = scmp.ne.s32.totalorder %s101, %s104
      %p110 = scmp.eq.s32.totalorder %s21, 0
      %p111 = por %p109, %p110
      %p112 = scmp.ne.s32.totalorder %s101, %s104
      %p113 = scmp.eq.s32.totalorder %s26, 1
      %p114 = por %p112, %p113
      %p115 = scmp.ne.s32.totalorder %s104, %s105
      %p116 = scmp.eq.s32.totalorder %s26, 0
      %p117 = por %p115, %p116
      %p118 = scmp.ne.s32.totalorder %s104, %s105
      %p119 = scmp.eq.s32.totalorder %s27, 1
      %p120 = por %p118, %p119
      %p122 = scmp.ne.s32.totalorder %s105, %s121
      %p123 = scmp.eq.s32.totalorder %s27, 0
      %p124 = por %p122, %p123
      %s125 = ssub.s32 %s28, %s40
      %p126 = scmp.eq.s32.totalorder %s125, 0
      %s128 = sadd.s32 %s127, 1
      %s129 = scalar_select %p126, %s127, %s128
      %p132 = pneg %p126
      %p133 = scmp.eq.s32.totalorder %s21, 1
      %p134 = por %p132, %p133
      %p135 = scmp.ne.s32.totalorder %s127, %s130
      %p136 = scmp.eq.s32.totalorder %s21, 0
      %p137 = por %p135, %p136
      %p138 = scmp.ne.s32.totalorder %s127, %s130
      %p139 = scmp.eq.s32.totalorder %s26, 1
      %p140 = por %p138, %p139
      %p141 = scmp.ne.s32.totalorder %s130, %s131
      %p142 = scmp.eq.s32.totalorder %s26, 0
      %p143 = por %p141, %p142
      %p144 = scmp.ne.s32.totalorder %s130, %s131
      %p145 = scmp.eq.s32.totalorder %s27, 1
      %p146 = por %p144, %p145
      %p148 = scmp.ne.s32.totalorder %s131, %s147
      %p149 = scmp.eq.s32.totalorder %s27, 0
      %p150 = por %p148, %p149
      %s152 = sadd.s32 %s151, 1
      %p155 = scmp.eq.s32.totalorder %s21, 1
      %p156 = scmp.ne.s32.totalorder %s151, %s153
      %p157 = scmp.eq.s32.totalorder %s21, 0
      %p158 = por %p156, %p157
      %p159 = scmp.ne.s32.totalorder %s151, %s153
      %p160 = scmp.eq.s32.totalorder %s26, 1
      %p161 = por %p159, %p160
      %p162 = scmp.ne.s32.totalorder %s153, %s154
      %p163 = scmp.eq.s32.totalorder %s26, 0
      %p164 = por %p162, %p163
      %p165 = scmp.ne.s32.totalorder %s153, %s154
      %p166 = scmp.eq.s32.totalorder %s27, 1
      %p167 = por %p165, %p166
      %p169 = scmp.ne.s32.totalorder %s154, %s168
      %p170 = scmp.eq.s32.totalorder %s27, 0
      %p171 = por %p169, %p170
      %s173 = sadd.s32 %s172, 1
      %p176 = scmp.eq.s32.totalorder %s21, 1
      %p177 = scmp.ne.s32.totalorder %s172, %s174
      %p178 = scmp.eq.s32.totalorder %s21, 0
      %p179 = por %p177, %p178
      %p180 = scmp.ne.s32.totalorder %s172, %s174
      %p181 = scmp.eq.s32.totalorder %s26, 1
      %p182 = por %p180, %p181
      %p183 = scmp.ne.s32.totalorder %s174, %s175
      %p184 = scmp.eq.s32.totalorder %s26, 0
      %p185 = por %p183, %p184
      %p186 = scmp.ne.s32.totalorder %s174, %s175
      %p187 = scmp.eq.s32.totalorder %s27, 1
      %p188 = por %p186, %p187
      %p190 = scmp.ne.s32.totalorder %s175, %s189
      %p191 = scmp.eq.s32.totalorder %s27, 0
      %p192 = por %p190, %p191
      %s193 = ssub.s32 %s28, %s40
      %s194 = ssub.s32 %s29, %s36
      %s195 = sor.u32 %s193, %s194
      %p196 = scmp.eq.s32.totalorder %s195, 0
      %s198 = sadd.s32 %s197, 1
      %s199 = scalar_select %p196, %s197, %s198
      %p202 = pneg %p196
      %p203 = scmp.eq.s32.totalorder %s21, 1
      %p204 = por %p202, %p203
      %p205 = scmp.ne.s32.totalorder %s197, %s200
      %p206 = scmp.eq.s32.totalorder %s21, 0
      %p207 = por %p205, %p206
      %p208 = scmp.ne.s32.totalorder %s197, %s200
      %p209 = scmp.eq.s32.totalorder %s26, 1
      %p210 = por %p208, %p209
      %p211 = scmp.ne.s32.totalorder %s200, %s201
      %p212 = scmp.eq.s32.totalorder %s26, 0
      %p213 = por %p211, %p212
      %p214 = scmp.ne.s32.totalorder %s200, %s201
      %p215 = scmp.eq.s32.totalorder %s27, 1
      %p216 = por %p214, %p215
      %p218 = scmp.ne.s32.totalorder %s201, %s217
      %p219 = scmp.eq.s32.totalorder %s27, 0
      %p220 = por %p218, %p219
      %s221 = ssub.s32 %s28, %s40
      %s222 = ssub.s32 %s29, %s36
      %s223 = sor.u32 %s221, %s222
      %p224 = scmp.eq.s32.totalorder %s223, 0
      %s226 = sadd.s32 %s225, 1
      %s227 = scalar_select %p224, %s225, %s226
      %p230 = pneg %p224
      %p231 = scmp.eq.s32.totalorder %s21, 1
      %p232 = por %p230, %p231
      %p233 = scmp.ne.s32.totalorder %s225, %s228
      %p234 = scmp.eq.s32.totalorder %s21, 0
      %p235 = por %p233, %p234
      %p236 = scmp.ne.s32.totalorder %s225, %s228
      %p237 = scmp.eq.s32.totalorder %s26, 1
      %p238 = por %p236, %p237
      %p239 = scmp.ne.s32.totalorder %s228, %s229
      %p240 = scmp.eq.s32.totalorder %s26, 0
      %p241 = por %p239, %p240
      %p242 = scmp.ne.s32.totalorder %s228, %s229
      %p243 = scmp.eq.s32.totalorder %s27, 1
      %p244 = por %p242, %p243
      %p246 = scmp.ne.s32.totalorder %s229, %s245
      %p247 = scmp.eq.s32.totalorder %s27, 0
      %p248 = por %p246, %p247
      %p249 = scmp.le.s32.totalorder 1, %s21
      %p250 = scmp.lt.s32.totalorder %s21, 3
      %p251 = pnand %p249, %p250
      %p252 = pneg %p251
      // Predicated region
      $region9: #{tpu_custom_call.1} parent=5 // pred_check
        _
      $region10: #{tpu_custom_call.1} parent=5 // pred_check_branch
        %254 = sbr.rel (%p251) target = $region12
      $region11: #{tpu_custom_call.1} parent=5 // pred_region
        %s255 = ssub.s32 %s21, 1
        // Predicated region
        $region13: #{tpu_custom_call.1} parent=11 // pred_check
          %p256 = pneg %p164
        $region14: #{tpu_custom_call.1} parent=11 // pred_check_branch
          %258 = sbr.rel (%p256) target = $region16
        $region15: #{tpu_custom_call.1} parent=11 // pred_region
          _
        $region16: #{tpu_custom_call.1} parent=11 // pred_fallthru
          _
        // Predicated region
        $region17: #{tpu_custom_call.1} parent=11 // pred_check
          %p259 = pneg %p185
        $region18: #{tpu_custom_call.1} parent=11 // pred_check_branch
          %261 = sbr.rel (%p259) target = $region20
        $region19: #{tpu_custom_call.1} parent=11 // pred_region
          _
        $region20: #{tpu_custom_call.1} parent=11 // pred_fallthru
          _
      $region12: #{tpu_custom_call.1} parent=5 // pred_fallthru
        _
      %p262 = scmp.lt.s32.totalorder %s21, 2
      // Predicated region
      $region21: #{tpu_custom_call.1} parent=5 // pred_check
        %p263 = pneg %p262
      $region22: #{tpu_custom_call.1} parent=5 // pred_check_branch
        %265 = sbr.rel (%p263) target = $region24
      $region23: #{tpu_custom_call.1} parent=5 // pred_region
        // Predicated region
        $region25: #{tpu_custom_call.1} parent=23 // pred_check
          %p266 = pneg %p55
        $region26: #{tpu_custom_call.1} parent=23 // pred_check_branch
          %268 = sbr.rel (%p266) target = $region28
        $region27: #{tpu_custom_call.1} parent=23 // pred_region
          %p269 = scmp.lt.s32.totalorder %s28, 1
          %s270 = scalar_select %p269, %s28, 1
          %p271 = scmp.lt.s32.totalorder %s29, 0
          %s272 = scalar_select %p271, %s29, 0
          %s273 = sadd.s32 %s272, %s270
          %s274 = smul.addr %s273, 8
          %s275 = scalar_lea.vmem %s0, %s274
        $region28: #{tpu_custom_call.1} parent=23 // pred_fallthru
          _
        // Predicated region
        $region29: #{tpu_custom_call.1} parent=23 // pred_check
          %p276 = pneg %p83
        $region30: #{tpu_custom_call.1} parent=23 // pred_check_branch
          %278 = sbr.rel (%p276) target = $region32
        $region31: #{tpu_custom_call.1} parent=23 // pred_region
          %p279 = scmp.lt.s32.totalorder %s28, 1
          %s280 = scalar_select %p279, %s28, 1
          %p281 = scmp.lt.s32.totalorder %s29, 0
          %s282 = scalar_select %p281, %s29, 0
          %s283 = sadd.s32 %s282, %s280
          %s284 = smul.addr %s283, 8
          %s285 = scalar_lea.vmem %s1, %s284
        $region32: #{tpu_custom_call.1} parent=23 // pred_fallthru
          _
        // Predicated region
        $region33: #{tpu_custom_call.1} parent=23 // pred_check
          %p286 = pneg %p111
        $region34: #{tpu_custom_call.1} parent=23 // pred_check_branch
          %288 = sbr.rel (%p286) target = $region36
        $region35: #{tpu_custom_call.1} parent=23 // pred_region
          %p289 = scmp.lt.s32.totalorder %s28, 1
          %s290 = scalar_select %p289, %s28, 1
          %p291 = scmp.lt.s32.totalorder %s29, 0
          %s292 = scalar_select %p291, %s29, 0
          %s293 = sadd.s32 %s292, %s290
          %s294 = smul.addr %s293, 8
          %s295 = scalar_lea.vmem %s2, %s294
        $region36: #{tpu_custom_call.1} parent=23 // pred_fallthru
          _
        // Predicated region
        $region37: #{tpu_custom_call.1} parent=23 // pred_check
          %p296 = pneg %p137
        $region38: #{tpu_custom_call.1} parent=23 // pred_check_branch
          %298 = sbr.rel (%p296) target = $region40
        $region39: #{tpu_custom_call.1} parent=23 // pred_region
          %p299 = scmp.lt.s32.totalorder %s28, 1
          %s300 = scalar_select %p299, %s28, 1
          %s301 = smul.addr %s300, 16
          %s302 = smul.addr %s301, 8
          %s303 = scalar_lea.vmem %s3, %s302
        $region40: #{tpu_custom_call.1} parent=23 // pred_fallthru
          _
      $region24: #{tpu_custom_call.1} parent=5 // pred_fallthru
        _
      %p304 = scmp.le.s32.totalorder 1, %s21
      %p305 = scmp.lt.s32.totalorder %s21, 3
      %p306 = pnand %p304, %p305
      %p307 = pneg %p306
      // Predicated region
      $region41: #{tpu_custom_call.1} parent=5 // pred_check
        _
      $region42: #{tpu_custom_call.1} parent=5 // pred_check_branch
        %309 = sbr.rel (%p306) target = $region44
      $region43: #{tpu_custom_call.1} parent=5 // pred_region
        %s310 = ssub.s32 %s21, 1
        %p311 = scmp.lt.s32.totalorder %s30, 1
        %s312 = scalar_select %p311, %s30, 1
        %p313 = scmp.lt.s32.totalorder %s31, 0
        %s314 = scalar_select %p313, %s31, 0
        %s315 = sadd.s32 %s314, %s312
        %s316 = smul.addr %s315, 8
        %s317 = scalar_lea.vmem %s0, %s316
        %p318 = pneg %p61
        %p319 = pneg %p58
        %p320 = scmp.lt.s32.totalorder %s30, 1
        %s321 = scalar_select %p320, %s30, 1
        %p322 = scmp.lt.s32.totalorder %s31, 0
        %s323 = scalar_select %p322, %s31, 0
        %s324 = sadd.s32 %s323, %s321
        %s325 = smul.addr %s324, 8
        %s326 = scalar_lea.vmem %s1, %s325
        %p327 = pneg %p89
        %p328 = pneg %p86
        %p329 = scmp.lt.s32.totalorder %s30, 1
        %s330 = scalar_select %p329, %s30, 1
        %p331 = scmp.lt.s32.totalorder %s31, 0
        %s332 = scalar_select %p331, %s31, 0
        %s333 = sadd.s32 %s332, %s330
        %s334 = smul.addr %s333, 8
        %s335 = scalar_lea.vmem %s2, %s334
        %p336 = pneg %p117
        %p337 = pneg %p114
        %p338 = scmp.lt.s32.totalorder %s30, 1
        %s339 = scalar_select %p338, %s30, 1
        %s340 = smul.addr %s339, 16
        %s341 = smul.addr %s340, 8
        %s342 = scalar_lea.vmem %s3, %s341
        %p343 = pneg %p143
        %p344 = pneg %p140
        %p345 = pneg %p164
        %p346 = pneg %p161
        %p347 = pneg %p185
        %p348 = pneg %p182
        %p349 = pneg %p213
        %p350 = pneg %p210
        %s351 = sand.u32 %s200, 1
        %s352 = scalar_lea.sflag [#allocation4], %s351
        %s353 = sand.u32 %s200, 1
        %s354 = smul.addr %s353, 8
        %s355 = scalar_lea.vmem [#allocation3], %s354
        %p356 = pneg %p241
        %p357 = pneg %p238
        %s358 = sand.u32 %s228, 1
        %s359 = scalar_lea.sflag [#allocation6], %s358
        %s360 = sand.u32 %s228, 1
        %s361 = smul.addr %s360, 8
        %s362 = scalar_lea.vmem [#allocation5], %s361
        %p363 = scmp.lt.s32.totalorder %s30, 1
        %s364 = scalar_select %p363, %s30, 1
        %p365 = scmp.lt.s32.totalorder %s31, 0
        %s366 = scalar_select %p365, %s31, 0
        %s367 = sadd.s32 %s366, %s364
        %s368 = smul.addr %s367, 8
        %s369 = scalar_lea.vmem %s0, %s368
        %p370 = scmp.lt.s32.totalorder %s30, 1
        %s371 = scalar_select %p370, %s30, 1
        %p372 = scmp.lt.s32.totalorder %s31, 0
        %s373 = scalar_select %p372, %s31, 0
        %s374 = sadd.s32 %s373, %s371
        %s375 = smul.addr %s374, 8
        %s376 = scalar_lea.vmem %s1, %s375
        %p377 = scmp.lt.s32.totalorder %s30, 1
        %s378 = scalar_select %p377, %s30, 1
        %p379 = scmp.lt.s32.totalorder %s31, 0
        %s380 = scalar_select %p379, %s31, 0
        %s381 = sadd.s32 %s380, %s378
        %s382 = smul.addr %s381, 8
        %s383 = scalar_lea.vmem %s2, %s382
        %p384 = scmp.lt.s32.totalorder %s30, 1
        %s385 = scalar_select %p384, %s30, 1
        %s386 = smul.addr %s385, 16
        %s387 = smul.addr %s386, 8
        %s388 = scalar_lea.vmem %s3, %s387
        %v389 = vld [vmem:[%s376] sm:$0xff]
        %390 = vmax.xlane.f32.xlu0 %v389
        %v391 = vpop.xlane.xlu0 %390
        %v392 = vsub.f32 %v389, %v391
        %v393 = vmul.f32 %v392, 1.442695
        %v394 = vpow.pop %v393
        %395 = vadd.xlane.f32.xlu0 %v394
        %v396 = vpop.xlane.xlu0 %395
        %v397 = vrcp.pop %v396
        %v398 = vmul.f32 %v394, %v397
        %v399 = vld [vmem:[%s369] sm:$0xff]
        %v400 = vld [vmem:[%s4] sm:$0x1]
        %v402 = vlaneseq
        %v403 = vshrl.u32 %v402, 7
        %v404 = vsub.s32 0, %v403
        %v405 = vrot.slane %v400, %v404
        %v407 = vmul.f32 %v399, %v405
        %vm408 = vcmask 261120
        %v409 = vsel %vm408, %v407, 0.0
        %410 = vadd.xlane.f32.xlu0 %v409
        %v411 = vpop.xlane.xlu0 %410
        %s412 = sld [smem:[#allocation2]]
        %v413 = vstv %s412
        %v414 = vadd.f32 %v411, %v413
        %v415 = vxor.u32 %v414, 2147483648
        %v416 = vmul.f32 %v415, 1.442695
        %v417 = vpow.pop %v416
        %v418 = vadd.f32 %v417, 1.0
        %v419 = vrcp.pop %v418
        %v420 = vmul.f32 1.0, %v419
        %v421 = vsub.f32 1.0, %v420
        %v422 = vmul.f32 %v398, %v421
        %423 = vst [vmem:[%s355] sm:$0xff] %v422
        %v424 = vld [vmem:[%s383] sm:$0xff]
        %v425 = vmul.f32 %v424, %v420
        %v426 = vld [vmem:[%s388] sm:$0xff]
        %v427 = vld [vmem:[%s388 + $0x8] sm:$0xff]
        %v428 = vld [vmem:[%s388 + $0x10] sm:$0xff]
        %v429 = vld [vmem:[%s388 + $0x18] sm:$0xff]
        %v430 = vld [vmem:[%s388 + $0x20] sm:$0xff]
        %v431 = vld [vmem:[%s388 + $0x28] sm:$0xff]
        %v432 = vld [vmem:[%s388 + $0x30] sm:$0xff]
        %v433 = vld [vmem:[%s388 + $0x38] sm:$0xff]
        %v434 = vld [vmem:[%s388 + $0x40] sm:$0xff]
        %v435 = vld [vmem:[%s388 + $0x48] sm:$0xff]
        %v436 = vld [vmem:[%s388 + $0x50] sm:$0xff]
        %v437 = vld [vmem:[%s388 + $0x58] sm:$0xff]
        %v438 = vld [vmem:[%s388 + $0x60] sm:$0xff]
        %v439 = vld [vmem:[%s388 + $0x68] sm:$0xff]
        %v440 = vld [vmem:[%s388 + $0x70] sm:$0xff]
        %v441 = vld [vmem:[%s388 + $0x78] sm:$0xff]
        %v442 = vlaneseq
        %v443 = vand.u32 %v442, 127
        %444 = vset.pattern.permute.xlu0 0
        %445 = vperm.xlu0 %444, %v426
        %v446 = vpop.permute.xlu0 %445
        %447 = vset.pattern.permute.xlu0 0
        %448 = vperm.xlu0 %447, %v427
        %v449 = vpop.permute.xlu0 %448
        %450 = vset.pattern.permute.xlu0 0
        %451 = vperm.xlu0 %450, %v428
        %v452 = vpop.permute.xlu0 %451
        %453 = vset.pattern.permute.xlu0 0
        %454 = vperm.xlu0 %453, %v429
        %v455 = vpop.permute.xlu0 %454
        %456 = vset.pattern.permute.xlu0 0
        %457 = vperm.xlu0 %456, %v430
        %v458 = vpop.permute.xlu0 %457
        %459 = vset.pattern.permute.xlu0 0
        %460 = vperm.xlu0 %459, %v431
        %v461 = vpop.permute.xlu0 %460
        %462 = vset.pattern.permute.xlu0 0
        %463 = vperm.xlu0 %462, %v432
        %v464 = vpop.permute.xlu0 %463
        %465 = vset.pattern.permute.xlu0 0
        %466 = vperm.xlu0 %465, %v433
        %v467 = vpop.permute.xlu0 %466
        %468 = vset.pattern.permute.xlu0 0
        %469 = vperm.xlu0 %468, %v434
        %v470 = vpop.permute.xlu0 %469
        %471 = vset.pattern.permute.xlu0 0
        %472 = vperm.xlu0 %471, %v435
        %v473 = vpop.permute.xlu0 %472
        %474 = vset.pattern.permute.xlu0 0
        %475 = vperm.xlu0 %474, %v436
        %v476 = vpop.permute.xlu0 %475
        %477 = vset.pattern.permute.xlu0 0
        %478 = vperm.xlu0 %477, %v437
        %v479 = vpop.permute.xlu0 %478
        %480 = vset.pattern.permute.xlu0 0
        %481 = vperm.xlu0 %480, %v438
        %v482 = vpop.permute.xlu0 %481
        %483 = vset.pattern.permute.xlu0 0
        %484 = vperm.xlu0 %483, %v439
        %v485 = vpop.permute.xlu0 %484
        %486 = vset.pattern.permute.xlu0 0
        %487 = vperm.xlu0 %486, %v440
        %v488 = vpop.permute.xlu0 %487
        %489 = vset.pattern.permute.xlu0 0
        %490 = vperm.xlu0 %489, %v441
        %v491 = vpop.permute.xlu0 %490
        %vm492 = vcmp.eq.s32.totalorder %v446, %v443
        %vm493 = vcmp.eq.s32.totalorder %v449, %v443
        %vm494 = vcmp.eq.s32.totalorder %v452, %v443
        %vm495 = vcmp.eq.s32.totalorder %v455, %v443
        %vm496 = vcmp.eq.s32.totalorder %v458, %v443
        %vm497 = vcmp.eq.s32.totalorder %v461, %v443
        %vm498 = vcmp.eq.s32.totalorder %v464, %v443
        %vm499 = vcmp.eq.s32.totalorder %v467, %v443
        %vm500 = vcmp.eq.s32.totalorder %v470, %v443
        %vm501 = vcmp.eq.s32.totalorder %v473, %v443
        %vm502 = vcmp.eq.s32.totalorder %v476, %v443
        %vm503 = vcmp.eq.s32.totalorder %v479, %v443
        %vm504 = vcmp.eq.s32.totalorder %v482, %v443
        %vm505 = vcmp.eq.s32.totalorder %v485, %v443
        %vm506 = vcmp.eq.s32.totalorder %v488, %v443
        %vm507 = vcmp.eq.s32.totalorder %v491, %v443
        %v508 = vsel %vm492, 1, 0
        %v509 = vsel %vm493, 1, 0
        %v510 = vsel %vm494, 1, 0
        %v511 = vsel %vm495, 1, 0
        %v512 = vsel %vm496, 1, 0
        %v513 = vsel %vm497, 1, 0
        %v514 = vsel %vm498, 1, 0
        %v515 = vsel %vm499, 1, 0
        %v516 = vsel %vm500, 1, 0
        %v517 = vsel %vm501, 1, 0
        %v518 = vsel %vm502, 1, 0
        %v519 = vsel %vm503, 1, 0
        %v520 = vsel %vm504, 1, 0
        %v521 = vsel %vm505, 1, 0
        %v522 = vsel %vm506, 1, 0
        %v523 = vsel %vm507, 1, 0
        %v524 = vcvt.s32.f32 %v508
        %v525 = vcvt.s32.f32 %v509
        %v526 = vcvt.s32.f32 %v510
        %v527 = vcvt.s32.f32 %v511
        %v528 = vcvt.s32.f32 %v512
        %v529 = vcvt.s32.f32 %v513
        %v530 = vcvt.s32.f32 %v514
        %v531 = vcvt.s32.f32 %v515
        %v532 = vcvt.s32.f32 %v516
        %v533 = vcvt.s32.f32 %v517
        %v534 = vcvt.s32.f32 %v518
        %v535 = vcvt.s32.f32 %v519
        %v536 = vcvt.s32.f32 %v520
        %v537 = vcvt.s32.f32 %v521
        %v538 = vcvt.s32.f32 %v522
        %v539 = vcvt.s32.f32 %v523
        %540 = vmatprep.subr.mxu0 0.0
        %541 = vmatpush1.msra.mxu0 %v524
        %542 = vmatprep.subr.mxu0 0.0
        %543 = vmatpush1.msra.mxu0 %v525
        %544 = vmatprep.subr.mxu0 0.0
        %545 = vmatpush1.msra.mxu0 %v526
        %546 = vmatprep.subr.mxu0 0.0
        %547 = vmatpush1.msra.mxu0 %v527
        %548 = vmatprep.subr.mxu0 0.0
        %549 = vmatpush1.msra.mxu0 %v528
        %550 = vmatprep.subr.mxu0 0.0
        %551 = vmatpush1.msra.mxu0 %v529
        %552 = vmatprep.subr.mxu0 0.0
        %553 = vmatpush1.msra.mxu0 %v530
        %554 = vmatprep.subr.mxu0 0.0
        %555 = vmatpush1.msra.mxu0 %v531
        %556 = vmatprep.subr.mxu0 0.0
        %557 = vmatpush1.msra.mxu0 %v532
        %558 = vmatprep.subr.mxu0 0.0
        %559 = vmatpush1.msra.mxu0 %v533
        %560 = vmatprep.subr.mxu0 0.0
        %561 = vmatpush1.msra.mxu0 %v534
        %562 = vmatprep.subr.mxu0 0.0
        %563 = vmatpush1.msra.mxu0 %v535
        %564 = vmatprep.subr.mxu0 0.0
        %565 = vmatpush1.msra.mxu0 %v536
        %566 = vmatprep.subr.mxu0 0.0
        %567 = vmatpush1.msra.mxu0 %v537
        %568 = vmatprep.subr.mxu0 0.0
        %569 = vmatpush1.msra.mxu0 %v538
        %570 = vmatprep.subr.mxu0 0.0
        %571 = vmatpush1.msra.mxu0 %v539
        %572 = vmatprep.subr.mxu0 0.0
        %573 = vmatpush1.msra.mxu0 0.0
        %574 = vmatprep.subr.mxu0 0.0
        %575 = vmatpush1.msra.mxu0 0.0
        %576 = vmatprep.subr.mxu0 0.0
        %577 = vmatpush1.msra.mxu0 0.0
        %578 = vmatprep.subr.mxu0 0.0
        %579 = vmatpush1.msra.mxu0 0.0
        %580 = vmatprep.subr.mxu0 0.0
        %581 = vmatpush1.msra.mxu0 0.0
        %582 = vmatprep.subr.mxu0 0.0
        %583 = vmatpush1.msra.mxu0 0.0
        %584 = vmatprep.subr.mxu0 0.0
        %585 = vmatpush1.msra.mxu0 0.0
        %586 = vmatprep.subr.mxu0 0.0
        %587 = vmatpush1.msra.mxu0 0.0
        %588 = vmatprep.subr.mxu0 0.0
        %589 = vmatpush1.msra.mxu0 0.0
        %590 = vmatprep.subr.mxu0 0.0
        %591 = vmatpush1.msra.mxu0 0.0
        %592 = vmatprep.subr.mxu0 0.0
        %593 = vmatpush1.msra.mxu0 0.0
        %594 = vmatprep.subr.mxu0 0.0
        %595 = vmatpush1.msra.mxu0 0.0
        %596 = vmatprep.subr.mxu0 0.0
        %597 = vmatpush1.msra.mxu0 0.0
        %598 = vmatprep.subr.mxu0 0.0
        %599 = vmatpush1.msra.mxu0 0.0
        %600 = vmatprep.subr.mxu0 0.0
        %601 = vmatpush1.msra.mxu0 0.0
        %602 = vmatprep.subr.mxu0 0.0
        %603 = vmatpush1.msra.mxu0 0.0
        %604 = vmatprep.mubr.f32.mxu0 0.0
        %605 = vmatmul.mubr.f32.gmra.mrb[0].mxu0 %v425
        %v606 = vpop.f32.mrb[0].mxu0
        %v607 = vadd.f32 0.0, %v606
        %v608 = vpop.f32.mrb[0].mxu0
        %609 = vdwg.mxu0
        %610 = vst [vmem:[%s362] sm:$0xff] %v607
        %s611 = sand.u32 %s200, 1
        %s612 = scalar_lea.sflag [#allocation4], %s611
        %s613 = sand.u32 %s200, 1
        %s614 = smul.addr %s613, 8
        %s615 = scalar_lea.vmem [#allocation3], %s614
        %s616 = sand.u32 %s228, 1
        %s617 = scalar_lea.sflag [#allocation6], %s616
        %s618 = sand.u32 %s228, 1
        %s619 = smul.addr %s618, 8
        %s620 = scalar_lea.vmem [#allocation5], %s619
        // Predicated region
        $region45: #{tpu_custom_call.1} parent=43 // pred_check
          %p621 = pneg %p210
        $region46: #{tpu_custom_call.1} parent=43 // pred_check_branch
          %623 = sbr.rel (%p621) target = $region48
        $region47: #{tpu_custom_call.1} parent=43 // pred_region
          %s625 = ssub.s32 128, 128
          %626 = vsyncadd %s612, %s625
          %s627 = sadd.s32 %s31, %s30
          %s628 = smul.addr %s627, 128
          %s629 = scalar_lea.hbm %s6, %s628
          %s631 = sshll.u32 %s615, 4
          %s632 = int_to_ptr.vmem [resolvable:$true] %s631
          %634 = dma.vmem_to_hbm [thread:$0]  %s632, 128, %s629, %s612
        $region48: #{tpu_custom_call.1} parent=43 // pred_fallthru
          _
        // Predicated region
        $region49: #{tpu_custom_call.1} parent=43 // pred_check
          %p635 = pneg %p238
        $region50: #{tpu_custom_call.1} parent=43 // pred_check_branch
          %637 = sbr.rel (%p635) target = $region52
        $region51: #{tpu_custom_call.1} parent=43 // pred_region
          %s639 = ssub.s32 128, 128
          %640 = vsyncadd %s617, %s639
          %s641 = sadd.s32 %s31, %s30
          %s642 = smul.addr %s641, 128
          %s643 = scalar_lea.hbm %s7, %s642
          %s645 = sshll.u32 %s620, 4
          %s646 = int_to_ptr.vmem [resolvable:$true] %s645
          %648 = dma.vmem_to_hbm [thread:$0]  %s646, 128, %s643, %s617
        $region52: #{tpu_custom_call.1} parent=43 // pred_fallthru
          _
      $region44: #{tpu_custom_call.1} parent=5 // pred_fallthru
        _
      %p649 = scmp.le.s32.totalorder 2, %s21
      // Predicated region
      $region53: #{tpu_custom_call.1} parent=5 // pred_check
        %p650 = pneg %p649
      $region54: #{tpu_custom_call.1} parent=5 // pred_check_branch
        %652 = sbr.rel (%p650) target = $region56
      $region55: #{tpu_custom_call.1} parent=5 // pred_region
        %s653 = ssub.s32 %s21, 2
        // Predicated region
        $region57: #{tpu_custom_call.1} parent=55 // pred_check
          %p654 = pneg %p216
        $region58: #{tpu_custom_call.1} parent=55 // pred_check_branch
          %656 = sbr.rel (%p654) target = $region60
        $region59: #{tpu_custom_call.1} parent=55 // pred_region
          %s657 = sand.u32 %s201, 1
          %s658 = scalar_lea.sflag [#allocation4], %s657
          %s659 = sand.u32 %s201, 1
          %s660 = smul.addr %s659, 8
          %s661 = scalar_lea.vmem [#allocation3], %s660
          %662 = dma.done %s658, 128
        $region60: #{tpu_custom_call.1} parent=55 // pred_fallthru
          _
        // Predicated region
        $region61: #{tpu_custom_call.1} parent=55 // pred_check
          %p663 = pneg %p244
        $region62: #{tpu_custom_call.1} parent=55 // pred_check_branch
          %665 = sbr.rel (%p663) target = $region64
        $region63: #{tpu_custom_call.1} parent=55 // pred_region
          %s666 = sand.u32 %s229, 1
          %s667 = scalar_lea.sflag [#allocation6], %s666
          %s668 = sand.u32 %s229, 1
          %s669 = smul.addr %s668, 8
          %s670 = scalar_lea.vmem [#allocation5], %s669
          %671 = dma.done %s667, 128
        $region64: #{tpu_custom_call.1} parent=55 // pred_fallthru
          _
      $region56: #{tpu_custom_call.1} parent=5 // pred_fallthru
        _
    $region6: #{tpu_custom_call.1} parent=1 // loop_footer
      %s25 = sadd.s32 1, %s21
    $region7: #{tpu_custom_call.1} parent=1 // loop_footer_branch
      %20 = sbr.rel target = $region3
    $region8: #{tpu_custom_call.1} parent=1 // loop_exit
      _
    %672 = vsyncpa [#allocation4], 1
    %s673 = scalar_lea.sflag [#allocation4], 1
    %674 = vsyncpa %s673, 1
    %675 = vsyncpa [#allocation6], 1
    %s676 = scalar_lea.sflag [#allocation6], 1
    %677 = vsyncpa %s676, 1

</llo_original>
